<compile_context>
chip_gen: v7x
topology: tpu7x:2x2x1
jax: 0.10.0
libtpu: 0.0.40
codegen_flags: <defaults>
</compile_context>

<pallas_src>
import functools

import jax
import jax.numpy as jnp
from jax.experimental import pallas as pl
from jax.experimental.pallas import tpu as pltpu

_HIDDEN = 256


def _q_fc_kernel(x_ref, a_ref, w1x_ref, w1a_ref, b1_ref, w2_ref, b2_ref,
                 w3_ref, b3_ref, o_ref):
    """Fused 3-layer MLP hot path: 2 MXU matmuls + biases + ReLUs + VPU head."""
    mm_dtype = w1x_ref.dtype            # f32, or bf16 when wrapper stores bf16 weights
    x = x_ref[...].astype(mm_dtype)
    a = a_ref[...].astype(mm_dtype)

    # Layer 1 (concat fused: x @ W1[:obs] + a @ W1[obs:]), f32 accumulation.
    h1 = (jnp.dot(x, w1x_ref[...], preferred_element_type=jnp.float32)
          + jnp.dot(a, w1a_ref[...], preferred_element_type=jnp.float32)
          + b1_ref[...])
    h1 = jnp.maximum(h1, 0.0)

    # Layer 2.
    h2 = jnp.dot(h1.astype(mm_dtype), w2_ref[...],
                 preferred_element_type=jnp.float32) + b2_ref[...]
    h2 = jnp.maximum(h2, 0.0)

    # Layer 3: output width 1 -> VPU multiply + lane reduction (skip the MXU).
    w3_row = w3_ref[...].astype(jnp.float32)                 # (1, H)
    y = jnp.sum(h2 * w3_row, axis=-1, keepdims=True) + b3_ref[0]
    o_ref[...] = y.astype(o_ref.dtype)


@functools.partial(jax.jit, static_argnames=("block_b",))
def q_fc_forward_pallas(x, a, w1x, w1a, b1, w2, b2, w3_row, b3, *, block_b):
    """x: [B, obs] f32, a: [B, act] f32 -> [B, 1] f32."""
    B, obs = x.shape
    act = a.shape[1]
    H = w2.shape[0]
    grid = (pl.cdiv(B, block_b),)       # ragged last tile: OOB reads ignored, writes masked

    return pl.pallas_call(
        _q_fc_kernel,
        out_shape=jax.ShapeDtypeStruct((B, 1), jnp.float32),
        grid_spec=pltpu.PrefetchScalarGridSpec(
            num_scalar_prefetch=0,
            grid=grid,
            in_specs=[
                pl.BlockSpec((block_b, obs), lambda i: (i, 0)),   # x tile (streams)
                pl.BlockSpec((block_b, act), lambda i: (i, 0)),   # a tile (streams)
                pl.BlockSpec((obs, H), lambda i: (0, 0)),         # W1[:obs]  (resident)
                pl.BlockSpec((act, H), lambda i: (0, 0)),         # W1[obs:]  (resident)
                pl.BlockSpec((1, H), lambda i: (0, 0)),           # b1        (resident)
                pl.BlockSpec((H, H), lambda i: (0, 0)),           # W2        (resident)
                pl.BlockSpec((1, H), lambda i: (0, 0)),           # b2        (resident)
                pl.BlockSpec((1, H), lambda i: (0, 0)),           # W3 as row (resident)
                pl.BlockSpec(memory_space=pltpu.MemorySpace.SMEM),  # b3 scalar in SMEM
            ],
            out_specs=pl.BlockSpec((block_b, 1), lambda i: (i, 0)),
        ),
        compiler_params=pltpu.CompilerParams(
            dimension_semantics=("parallel",)),    # megacore-shardable batch axis (v7x)
    )(x, a, w1x, w1a, b1, w2, b2, w3_row, b3)


def _round_up(n, m):
    return ((n + m - 1) // m) * m


def _pick_block_b(batch):
    """Batch-tile size: as large as possible (MXU fill, fewer grid steps), but
    keep >= 2 grid steps for moderate/large batches so v7x's two TensorCores
    both get work.  VMEM is never the constraint for this kernel."""
    b8 = _round_up(max(batch, 1), 8)
    if b8 <= 128:
        return b8                              # tiny batch: single tile
    if b8 <= 512:
        return _round_up(pl.cdiv(b8, 2), 8)    # two balanced tiles
    return 256                                 # >= 2 tiles of 256 rows


def _broadcast_action(x, a, action_size):
    """Reproduce Q_FC.forward's x/a shape reconciliation (glue, plain JAX)."""
    if x.ndim > 1 and a.ndim == 1 and a.shape[0] == action_size:
        a = jnp.tile(a[None, :], (x.shape[0], 1))
    elif x.ndim == 1 and a.ndim > 1 and a.shape[0] == 1:
        a = a[0]
    elif x.ndim > 1 and a.ndim > 1 and x.shape[0] != a.shape[0]:
        if a.shape[0] == 1 and x.shape[0] > 1:
            a = jnp.tile(a, (x.shape[0], 1))
        else:
            raise ValueError(
                f"Shape mismatch in Q_FC: x.shape={x.shape}, a.shape={a.shape}")
    return a


class QFCPallas:
    """Deterministically-initialized Pallas port of Q_FC."""

    def __init__(self, obs_size, action_size, key, *, use_bf16=False):
        self.obs_size = obs_size
        self.action_size = action_size
        d_in = obs_size + action_size
        H = _HIDDEN
        ks = jax.random.split(key, 6)

        def linear_init(kw, kb, fan_in, fan_out):
            # torch.nn.Linear default: U(-1/sqrt(fan_in), 1/sqrt(fan_in))
            bound = 1.0 / jnp.sqrt(jnp.float32(fan_in))
            w = jax.random.uniform(kw, (fan_in, fan_out), jnp.float32,
                                   minval=-bound, maxval=bound)
            b = jax.random.uniform(kb, (1, fan_out), jnp.float32,
                                   minval=-bound, maxval=bound)
            return w, b

        mm_dtype = jnp.bfloat16 if use_bf16 else jnp.float32

        w1, b1 = linear_init(ks[0], ks[1], d_in, H)
        w2, b2 = linear_init(ks[2], ks[3], H, H)
        w3, b3 = linear_init(ks[4], ks[5], H, 1)

        # W1 pre-split along its input rows so the kernel fuses the concat.
        self.w1x = w1[:obs_size].astype(mm_dtype)
        self.w1a = w1[obs_size:].astype(mm_dtype)
        self.b1 = b1                         # biases / head stay f32
        self.w2 = w2.astype(mm_dtype)
        self.b2 = b2
        self.w3_row = w3.T                   # (1, H) row for the VPU reduction
        self.b3 = b3.reshape((1,))           # scalar, lives in SMEM

    def __call__(self, x, a):
        a = _broadcast_action(x, a, self.action_size)
        squeeze = False
        if x.ndim == 1:                      # single-sample path
            x, a = x[None, :], a[None, :]
            squeeze = True
        x = jnp.asarray(x, jnp.float32)
        a = jnp.asarray(a, jnp.float32)

        block_b = _pick_block_b(x.shape[0])
        y = q_fc_forward_pallas(x, a, self.w1x, self.w1a, self.b1,
                                self.w2, self.b2, self.w3_row, self.b3,
                                block_b=block_b)
        return y[0] if squeeze else y


def _reference_forward(model, x, a):
    a = _broadcast_action(x, a, model.action_size)
    if x.ndim == 1:
        x, a = x[None, :], a[None, :]
    x = jnp.asarray(x, jnp.float32)
    a = jnp.asarray(a, jnp.float32)
    c = jnp.concatenate([x, a], axis=-1)
    w1 = jnp.concatenate([model.w1x, model.w1a], axis=0).astype(jnp.float32)
    h1 = jnp.maximum(c @ w1 + model.b1, 0.0)
    h2 = jnp.maximum(h1 @ model.w2.astype(jnp.float32) + model.b2, 0.0)
    return h2 @ model.w3_row.T.astype(jnp.float32) + model.b3


if __name__ == "__main__":
    key = jax.random.PRNGKey(0)
    k_param, k_x, k_a = jax.random.split(key, 3)

    obs_size, action_size = 24, 8
    model = QFCPallas(obs_size, action_size, k_param)

    # 1) Batched path; action broadcast from a single row (exercises repeat branch).
    batch = 16
    x = jax.random.normal(k_x, (batch, obs_size), jnp.float32)
    a = jax.random.normal(k_a, (1, action_size), jnp.float32)
    y = jax.block_until_ready(model(x, a))
    y_ref = _reference_forward(model, x, a)
    assert y.shape == (batch, 1)
    assert jnp.allclose(y, y_ref, atol=1e-4, rtol=1e-4), "batched mismatch vs reference"

    # 2) Uneven batch (ragged last tile: OOB rows masked on writeback, no pad copy).
    x13 = x[:13]
    a13 = jax.random.normal(k_a, (13, action_size), jnp.float32)
    y13 = jax.block_until_ready(model(x13, a13))
    assert y13.shape == (13, 1)
    assert jnp.allclose(y13, _reference_forward(model, x13, a13),
                        atol=1e-4, rtol=1e-4), "uneven-batch mismatch vs reference"

    # 3) Single-sample 1-D path (a squeezed, output shape (1,)).
    y1 = jax.block_until_ready(model(x[0], a))
    assert y1.shape == (1,)
    assert jnp.allclose(y1, _reference_forward(model, x[0], a)[0],
                        atol=1e-4, rtol=1e-4), "single-sample mismatch vs reference"

    # 4) bf16-weight variant (v5e MXU-native / halved DMA); f32 accumulation,
    #    so only a loose tolerance against the f32 reference is expected.
    model_bf16 = QFCPallas(obs_size, action_size, k_param, use_bf16=True)
    yb = jax.block_until_ready(model_bf16(x, a))
    assert yb.shape == (batch, 1)
    assert jnp.allclose(yb, _reference_forward(model_bf16, x, a),
                        atol=1e-1, rtol=1e-1), "bf16 path diverged from reference"

    print("KERNEL_OK")
</pallas_src>

<mosaic_0001>
module attributes {stable_mosaic.version = 11 : i64} {
  func.func @_q_fc_kernel(%arg0: i32, %arg1: memref<16x24xf32, #tpu.memory_space<vmem>>, %arg2: memref<16x8xf32, #tpu.memory_space<vmem>>, %arg3: memref<24x256xf32, #tpu.memory_space<vmem>>, %arg4: memref<8x256xf32, #tpu.memory_space<vmem>>, %arg5: memref<1x256xf32, #tpu.memory_space<vmem>>, %arg6: memref<256x256xf32, #tpu.memory_space<vmem>>, %arg7: memref<1x256xf32, #tpu.memory_space<vmem>>, %arg8: memref<1x256xf32, #tpu.memory_space<vmem>>, %arg9: memref<1xf32, #tpu.memory_space<smem>>, %arg10: memref<16x1xf32, #tpu.memory_space<vmem>>) attributes {dimension_semantics = [#tpu.dimension_semantics<parallel>], iteration_bounds = array<i64: 1>, scalar_prefetch = 0 : i64, scratch_operands = 0 : i64, tpu.core_type = #tpu.core_type<tc>, window_params = [{transform_indices = @transform_0, window_bounds = array<i64: 16, 24>}, {transform_indices = @transform_1, window_bounds = array<i64: 16, 8>}, {pipeline_mode = #tpu.pipeline_mode<synchronous>, transform_indices = @transform_2, window_bounds = array<i64: 24, 256>}, {pipeline_mode = #tpu.pipeline_mode<synchronous>, transform_indices = @transform_3, window_bounds = array<i64: 8, 256>}, {pipeline_mode = #tpu.pipeline_mode<synchronous>, transform_indices = @transform_4, window_bounds = array<i64: 1, 256>}, {pipeline_mode = #tpu.pipeline_mode<synchronous>, transform_indices = @transform_5, window_bounds = array<i64: 256, 256>}, {pipeline_mode = #tpu.pipeline_mode<synchronous>, transform_indices = @transform_6, window_bounds = array<i64: 1, 256>}, {pipeline_mode = #tpu.pipeline_mode<synchronous>, transform_indices = @transform_7, window_bounds = array<i64: 1, 256>}, {transform_indices = @transform_8, window_bounds = array<i64: 1>}, {transform_indices = @transform_9, window_bounds = array<i64: 16, 1>}]} {
    %c0 = arith.constant 0 : index
    %c0_0 = arith.constant 0 : index
    %0 = vector.load %arg1[%c0, %c0_0] : memref<16x24xf32, #tpu.memory_space<vmem>>, vector<16x24xf32>
    %c0_1 = arith.constant 0 : index
    %c0_2 = arith.constant 0 : index
    %1 = vector.load %arg2[%c0_1, %c0_2] : memref<16x8xf32, #tpu.memory_space<vmem>>, vector<16x8xf32>
    %c0_3 = arith.constant 0 : index
    %c0_4 = arith.constant 0 : index
    %2 = vector.load %arg3[%c0_3, %c0_4] : memref<24x256xf32, #tpu.memory_space<vmem>>, vector<24x256xf32>
    %cst = arith.constant dense<0.000000e+00> : vector<16x256xf32>
    %3 = tpu.matmul %0, %2, %cst {dimension_numbers = #tpu.dot_dimension_numbers<[1], [0], [0], [1], [0, 0, 1, 1], [], []>} : vector<16x24xf32>, vector<24x256xf32>, vector<16x256xf32> -> vector<16x256xf32>
    %c0_5 = arith.constant 0 : index
    %c0_6 = arith.constant 0 : index
    %4 = vector.load %arg4[%c0_5, %c0_6] : memref<8x256xf32, #tpu.memory_space<vmem>>, vector<8x256xf32>
    %cst_7 = arith.constant dense<0.000000e+00> : vector<16x256xf32>
    %5 = tpu.matmul %1, %4, %cst_7 {dimension_numbers = #tpu.dot_dimension_numbers<[1], [0], [0], [1], [0, 0, 1, 1], [], []>} : vector<16x8xf32>, vector<8x256xf32>, vector<16x256xf32> -> vector<16x256xf32>
    %6 = arith.addf %3, %5 : vector<16x256xf32>
    %c0_8 = arith.constant 0 : index
    %c0_9 = arith.constant 0 : index
    %7 = vector.load %arg5[%c0_8, %c0_9] : memref<1x256xf32, #tpu.memory_space<vmem>>, vector<1x256xf32>
    %8 = vector.broadcast %7 : vector<1x256xf32> to vector<16x256xf32>
    %9 = arith.addf %6, %8 : vector<16x256xf32>
    %cst_10 = arith.constant 0.000000e+00 : f32
    %10 = vector.broadcast %cst_10 : f32 to vector<16x256xf32>
    %11 = arith.maximumf %9, %10 : vector<16x256xf32>
    %c0_11 = arith.constant 0 : index
    %c0_12 = arith.constant 0 : index
    %12 = vector.load %arg6[%c0_11, %c0_12] : memref<256x256xf32, #tpu.memory_space<vmem>>, vector<256x256xf32>
    %cst_13 = arith.constant dense<0.000000e+00> : vector<16x256xf32>
    %13 = tpu.matmul %11, %12, %cst_13 {dimension_numbers = #tpu.dot_dimension_numbers<[1], [0], [0], [1], [0, 0, 1, 1], [], []>} : vector<16x256xf32>, vector<256x256xf32>, vector<16x256xf32> -> vector<16x256xf32>
    %c0_14 = arith.constant 0 : index
    %c0_15 = arith.constant 0 : index
    %14 = vector.load %arg7[%c0_14, %c0_15] : memref<1x256xf32, #tpu.memory_space<vmem>>, vector<1x256xf32>
    %15 = vector.broadcast %14 : vector<1x256xf32> to vector<16x256xf32>
    %16 = arith.addf %13, %15 : vector<16x256xf32>
    %cst_16 = arith.constant 0.000000e+00 : f32
    %17 = vector.broadcast %cst_16 : f32 to vector<16x256xf32>
    %18 = arith.maximumf %16, %17 : vector<16x256xf32>
    %c0_17 = arith.constant 0 : index
    %c0_18 = arith.constant 0 : index
    %19 = vector.load %arg8[%c0_17, %c0_18] : memref<1x256xf32, #tpu.memory_space<vmem>>, vector<1x256xf32>
    %20 = vector.broadcast %19 : vector<1x256xf32> to vector<16x256xf32>
    %21 = arith.mulf %18, %20 : vector<16x256xf32>
    %cst_19 = arith.constant dense<0.000000e+00> : vector<16xf32>
    %22 = vector.multi_reduction <add>, %21, %cst_19 [1] : vector<16x256xf32> to vector<16xf32>
    %23 = vector.shape_cast %22 : vector<16xf32> to vector<16x1xf32>
    %c0_20 = arith.constant 0 : index
    %24 = memref.load %arg9[%c0_20] : memref<1xf32, #tpu.memory_space<smem>>
    %25 = vector.broadcast %24 : f32 to vector<16x1xf32>
    %26 = arith.addf %23, %25 : vector<16x1xf32>
    %c0_21 = arith.constant 0 : index
    %c0_22 = arith.constant 0 : index
    %27 = vector.load %arg10[%c0_21, %c0_22] : memref<16x1xf32, #tpu.memory_space<vmem>>, vector<16x1xf32>
    tpu.vector_store %arg10[%c0_21, %c0_22], %26 {strides = array<i32>} : memref<16x1xf32, #tpu.memory_space<vmem>>, vector<16x1xf32>,
    return
  }
  func.func @transform_0(%arg0: i32) -> (i32, i32) {
    %c0_i32 = arith.constant 0 : i32
    %c0_i32_0 = arith.constant 0 : i32
    return %arg0, %c0_i32 : i32, i32
  }
  func.func @transform_1(%arg0: i32) -> (i32, i32) {
    %c0_i32 = arith.constant 0 : i32
    %c0_i32_0 = arith.constant 0 : i32
    return %arg0, %c0_i32 : i32, i32
  }
  func.func @transform_2(%arg0: i32) -> (i32, i32) {
    %c0_i32 = arith.constant 0 : i32
    %c0_i32_0 = arith.constant 0 : i32
    %c0_i32_1 = arith.constant 0 : i32
    return %c0_i32, %c0_i32_0 : i32, i32
  }
  func.func @transform_3(%arg0: i32) -> (i32, i32) {
    %c0_i32 = arith.constant 0 : i32
    %c0_i32_0 = arith.constant 0 : i32
    %c0_i32_1 = arith.constant 0 : i32
    return %c0_i32, %c0_i32_0 : i32, i32
  }
  func.func @transform_4(%arg0: i32) -> (i32, i32) {
    %c0_i32 = arith.constant 0 : i32
    %c0_i32_0 = arith.constant 0 : i32
    %c0_i32_1 = arith.constant 0 : i32
    return %c0_i32, %c0_i32_0 : i32, i32
  }
  func.func @transform_5(%arg0: i32) -> (i32, i32) {
    %c0_i32 = arith.constant 0 : i32
    %c0_i32_0 = arith.constant 0 : i32
    %c0_i32_1 = arith.constant 0 : i32
    return %c0_i32, %c0_i32_0 : i32, i32
  }
  func.func @transform_6(%arg0: i32) -> (i32, i32) {
    %c0_i32 = arith.constant 0 : i32
    %c0_i32_0 = arith.constant 0 : i32
    %c0_i32_1 = arith.constant 0 : i32
    return %c0_i32, %c0_i32_0 : i32, i32
  }
  func.func @transform_7(%arg0: i32) -> (i32, i32) {
    %c0_i32 = arith.constant 0 : i32
    %c0_i32_0 = arith.constant 0 : i32
    %c0_i32_1 = arith.constant 0 : i32
    return %c0_i32, %c0_i32_0 : i32, i32
  }
  func.func @transform_8(%arg0: i32) -> i32 {
    %c0_i32 = arith.constant 0 : i32
    %c0_i32_0 = arith.constant 0 : i32
    return %c0_i32 : i32
  }
  func.func @transform_9(%arg0: i32) -> (i32, i32) {
    %c0_i32 = arith.constant 0 : i32
    %c0_i32_0 = arith.constant 0 : i32
    return %arg0, %c0_i32 : i32, i32
  }
}

</mosaic_0001>

<llo_original>
// kernel: q_fc_forward_pallas.1
$region0: #{q_fc_forward_pallas.1}
  #allocation0 [shape = 'u32[]', space=smem, size = 0x4, offset = 0x4, fixed_abs, tag = 'smem constant byte address 0x4 - core index']
  #allocation1 [shape = 'u32[144,128]{1,0:T(1,128)}', space=vmem, size = 0x12000, scoped, tag = 'internal scratch']
  #allocation2 [shape = 'f32[1]{0:T(128)S(6)}', space=smem, size = 0x200, scoped, tag = 'scoped memory for q_fc_forward_pallas.1']
  %s0 = inlined_call_operand.vmem [shape: f32[16,24], index: 0, kind: input, shape index: {}]
  %s1 = inlined_call_operand.vmem [shape: f32[16,8], index: 1, kind: input, shape index: {}]
  %s2 = inlined_call_operand.hbm [shape: f32[24,256], index: 2, kind: input, shape index: {}]
  %s3 = inlined_call_operand.vmem [shape: f32[8,256], index: 3, kind: input, shape index: {}]
  %s4 = inlined_call_operand.vmem [shape: f32[1,256], index: 4, kind: input, shape index: {}]
  %s5 = inlined_call_operand.hbm [shape: f32[256,256], index: 5, kind: input, shape index: {}]
  %s6 = inlined_call_operand.vmem [shape: f32[1,256], index: 6, kind: input, shape index: {}]
  %s7 = inlined_call_operand.vmem [shape: f32[1,256], index: 7, kind: input, shape index: {}]
  %s8 = inlined_call_operand.<no memory space> [shape: f32[1], index: 8, kind: input, shape index: {}]
  %s9 = inlined_call_operand.vmem [shape: f32[16,1], index: 9, kind: output, shape index: {}]
  %s10 = sld [smem:[#allocation0]]
  $region54: #{q_fc_forward_pallas.1} parent=0
    _
  %s12 = ssub.s32 1, %s10
  %s13 = scalar_select 0, %s12, %s10
  %14 = sst [smem:[#allocation2]] %s8
  $region1: #{q_fc_forward_pallas.1} parent=0
    #allocation3 [shape = 'u8[24576]{0}', space=vmem, size = 0x6000, scoped, tag = 'input window, operand 2, single buffered']
    #allocation4 [shape = 's32[1]{0}', space=sflag, size = 0x4, scoped, tag = 'scoped memory for q_fc_forward_pallas.1']
    #allocation5 [shape = 'u8[262144]{0}', space=vmem, size = 0x40000, scoped, tag = 'input window, operand 5, single buffered']
    #allocation6 [shape = 's32[1]{0}', space=sflag, size = 0x4, scoped, tag = 'scoped memory for q_fc_forward_pallas.1']
    %15 = vsyncpa [#allocation4], 0
    %16 = vsyncpa [#allocation6], 0
    // Predicated region
    $region2: #{q_fc_forward_pallas.1} parent=1 // pred_check
      _
    $region3: #{q_fc_forward_pallas.1} parent=1 // pred_check_branch
      %18 = sbr.rel (0) target = $region5
    $region4: #{q_fc_forward_pallas.1} parent=1 // pred_region
      _
    $region5: #{q_fc_forward_pallas.1} parent=1 // pred_fallthru
      _
    // Predicated region
    $region6: #{q_fc_forward_pallas.1} parent=1 // pred_check
      _
    $region7: #{q_fc_forward_pallas.1} parent=1 // pred_check_branch
      %20 = sbr.rel (0) target = $region9
    $region8: #{q_fc_forward_pallas.1} parent=1 // pred_region
      _
    $region9: #{q_fc_forward_pallas.1} parent=1 // pred_fallthru
      _
    // Predicated region
    $region10: #{q_fc_forward_pallas.1} parent=1 // pred_check
      _
    $region11: #{q_fc_forward_pallas.1} parent=1 // pred_check_branch
      %22 = sbr.rel (0) target = $region13
    $region12: #{q_fc_forward_pallas.1} parent=1 // pred_region
      %s24 = ssub.s32 768, 768
      %25 = vsyncadd [#allocation4], %s24
      %s26 = sshll.u32 [#allocation3], 4
      %s27 = int_to_ptr.vmem [resolvable:$true] %s26
      %32 = dma.hbm_to_vmem [thread:$0]  %s2, 768, %s27, [#allocation4], 256, 256, 16
    $region13: #{q_fc_forward_pallas.1} parent=1 // pred_fallthru
      _
    // Predicated region
    $region14: #{q_fc_forward_pallas.1} parent=1 // pred_check
      _
    $region15: #{q_fc_forward_pallas.1} parent=1 // pred_check_branch
      %34 = sbr.rel (0) target = $region17
    $region16: #{q_fc_forward_pallas.1} parent=1 // pred_region
      _
    $region17: #{q_fc_forward_pallas.1} parent=1 // pred_fallthru
      _
    // Predicated region
    $region18: #{q_fc_forward_pallas.1} parent=1 // pred_check
      _
    $region19: #{q_fc_forward_pallas.1} parent=1 // pred_check_branch
      %36 = sbr.rel (0) target = $region21
    $region20: #{q_fc_forward_pallas.1} parent=1 // pred_region
      _
    $region21: #{q_fc_forward_pallas.1} parent=1 // pred_fallthru
      _
    // Predicated region
    $region22: #{q_fc_forward_pallas.1} parent=1 // pred_check
      _
    $region23: #{q_fc_forward_pallas.1} parent=1 // pred_check_branch
      %38 = sbr.rel (0) target = $region25
    $region24: #{q_fc_forward_pallas.1} parent=1 // pred_region
      %s40 = ssub.s32 8192, 8192
      %41 = vsyncadd [#allocation6], %s40
      %s42 = sshll.u32 [#allocation5], 4
      %s43 = int_to_ptr.vmem [resolvable:$true] %s42
      %48 = dma.hbm_to_vmem [thread:$0]  %s5, 8192, %s43, [#allocation6], 256, 256, 16
    $region25: #{q_fc_forward_pallas.1} parent=1 // pred_fallthru
      _
    // Predicated region
    $region26: #{q_fc_forward_pallas.1} parent=1 // pred_check
      _
    $region27: #{q_fc_forward_pallas.1} parent=1 // pred_check_branch
      %50 = sbr.rel (0) target = $region29
    $region28: #{q_fc_forward_pallas.1} parent=1 // pred_region
      _
    $region29: #{q_fc_forward_pallas.1} parent=1 // pred_fallthru
      _
    // Predicated region
    $region30: #{q_fc_forward_pallas.1} parent=1 // pred_check
      _
    $region31: #{q_fc_forward_pallas.1} parent=1 // pred_check_branch
      %52 = sbr.rel (0) target = $region33
    $region32: #{q_fc_forward_pallas.1} parent=1 // pred_region
      _
    $region33: #{q_fc_forward_pallas.1} parent=1 // pred_fallthru
      _
    // Predicated region
    $region34: #{q_fc_forward_pallas.1} parent=1 // pred_check
      _
    $region35: #{q_fc_forward_pallas.1} parent=1 // pred_check_branch
      %54 = sbr.rel (0) target = $region37
    $region36: #{q_fc_forward_pallas.1} parent=1 // pred_region
      _
    $region37: #{q_fc_forward_pallas.1} parent=1 // pred_fallthru
      _
    // Predicated region
    $region38: #{q_fc_forward_pallas.1} parent=1 // pred_check
      _
    $region39: #{q_fc_forward_pallas.1} parent=1 // pred_check_branch
      %56 = sbr.rel (0) target = $region41
    $region40: #{q_fc_forward_pallas.1} parent=1 // pred_region
      %57 = dma.done [#allocation4], 768
    $region41: #{q_fc_forward_pallas.1} parent=1 // pred_fallthru
      _
    // Predicated region
    $region42: #{q_fc_forward_pallas.1} parent=1 // pred_check
      _
    $region43: #{q_fc_forward_pallas.1} parent=1 // pred_check_branch
      %59 = sbr.rel (0) target = $region45
    $region44: #{q_fc_forward_pallas.1} parent=1 // pred_region
      %60 = dma.done [#allocation6], 8192
    $region45: #{q_fc_forward_pallas.1} parent=1 // pred_fallthru
      _
    %v61 = vld [vmem:[%s0] sm:$0xff]
    %v62 = vld [vmem:[%s0 + $0x8] sm:$0xff]
    %v63 = vld [vmem:[%s1] sm:$0xff]
    %v64 = vld [vmem:[%s1 + $0x8] sm:$0xff]
    %v65 = vld [vmem:[#allocation3] sm:$0xff]
    %v66 = vld [vmem:[#allocation3 + $0x8] sm:$0xff]
    %v67 = vld [vmem:[#allocation3 + $0x10] sm:$0xff]
    %v68 = vld [vmem:[#allocation3 + $0x18] sm:$0xff]
    %v69 = vld [vmem:[#allocation3 + $0x20] sm:$0xff]
    %v70 = vld [vmem:[#allocation3 + $0x28] sm:$0xff]
    %v71 = vld [vmem:[%s3] sm:$0xff]
    %v72 = vld [vmem:[%s3 + $0x8] sm:$0xff]
    %vm73 = vcmask 64512
    %v75 = vsel %vm73, %v63, 0
    %v78 = vsel %vm73, %v64, 0
    %80 = vmatprep.subr.mxu0 %v72
    %81 = vmatpush1.msra.mxu0 %v71
    %82 = vmatprep.subr.mxu0 0.0
    %83 = vmatpush1.msra.mxu0 0.0
    %84 = vmatprep.subr.mxu0 0.0
    %85 = vmatpush1.msra.mxu0 0.0
    %86 = vmatprep.subr.mxu0 0.0
    %87 = vmatpush1.msra.mxu0 0.0
    %88 = vmatprep.subr.mxu0 0.0
    %89 = vmatpush1.msra.mxu0 0.0
    %90 = vmatprep.subr.mxu0 0.0
    %91 = vmatpush1.msra.mxu0 0.0
    %92 = vmatprep.subr.mxu0 0.0
    %93 = vmatpush1.msra.mxu0 0.0
    %94 = vmatprep.subr.mxu0 0.0
    %95 = vmatpush1.msra.mxu0 0.0
    %96 = vmatprep.subr.mxu0 0.0
    %97 = vmatpush1.msra.mxu0 0.0
    %98 = vmatprep.subr.mxu0 0.0
    %99 = vmatpush1.msra.mxu0 0.0
    %100 = vmatprep.subr.mxu0 0.0
    %101 = vmatpush1.msra.mxu0 0.0
    %102 = vmatprep.subr.mxu0 0.0
    %103 = vmatpush1.msra.mxu0 0.0
    %104 = vmatprep.subr.mxu0 0.0
    %105 = vmatpush1.msra.mxu0 0.0
    %106 = vmatprep.subr.mxu0 0.0
    %107 = vmatpush1.msra.mxu0 0.0
    %108 = vmatprep.subr.mxu0 0.0
    %109 = vmatpush1.msra.mxu0 0.0
    %110 = vmatprep.subr.mxu0 0.0
    %111 = vmatpush1.msra.mxu0 0.0
    %112 = vmatprep.subr.mxu0 0.0
    %113 = vmatpush1.msra.mxu0 0.0
    %114 = vmatprep.subr.mxu0 0.0
    %115 = vmatpush1.msra.mxu0 0.0
    %116 = vmatprep.subr.mxu0 0.0
    %117 = vmatpush1.msra.mxu0 0.0
    %118 = vmatprep.subr.mxu0 0.0
    %119 = vmatpush1.msra.mxu0 0.0
    %120 = vmatprep.subr.mxu0 0.0
    %121 = vmatpush1.msra.mxu0 0.0
    %122 = vmatprep.subr.mxu0 0.0
    %123 = vmatpush1.msra.mxu0 0.0
    %124 = vmatprep.subr.mxu0 0.0
    %125 = vmatpush1.msra.mxu0 0.0
    %126 = vmatprep.subr.mxu0 0.0
    %127 = vmatpush1.msra.mxu0 0.0
    %128 = vmatprep.subr.mxu0 0.0
    %129 = vmatpush1.msra.mxu0 0.0
    %130 = vmatprep.subr.mxu0 0.0
    %131 = vmatpush1.msra.mxu0 0.0
    %132 = vmatprep.subr.mxu0 0.0
    %133 = vmatpush1.msra.mxu0 0.0
    %134 = vmatprep.subr.mxu0 0.0
    %135 = vmatpush1.msra.mxu0 0.0
    %136 = vmatprep.subr.mxu0 0.0
    %137 = vmatpush1.msra.mxu0 0.0
    %138 = vmatprep.subr.mxu0 0.0
    %139 = vmatpush1.msra.mxu0 0.0
    %140 = vmatprep.subr.mxu0 0.0
    %141 = vmatpush1.msra.mxu0 0.0
    %142 = vmatprep.subr.mxu0 0.0
    %143 = vmatpush1.msra.mxu0 0.0
    %144 = vmatprep.mubr.f32.mxu0 0.0
    %145 = vmatmul.mubr.f32.gmra.mrb[0].mxu0 %v75
    %v146 = vpop.f32.mrb[0].mxu0
    %v147 = vadd.f32 0.0, %v146
    %v148 = vpop.f32.mrb[0].mxu0
    %v149 = vadd.f32 0.0, %v148
    %150 = vmatprep.mubr.f32.mxu0 0.0
    %151 = vmatmul.mubr.f32.gmra.mrb[0].mxu0 %v78
    %v152 = vpop.f32.mrb[0].mxu0
    %v153 = vadd.f32 0.0, %v152
    %v154 = vpop.f32.mrb[0].mxu0
    %v155 = vadd.f32 0.0, %v154
    %156 = vdwg.mxu0
    %vm157 = vcmask 195584
    %v159 = vsel %vm157, %v61, 0
    %v162 = vsel %vm157, %v62, 0
    %164 = vmatprep.subr.mxu0 %v66
    %165 = vmatpush1.msra.mxu0 %v65
    %166 = vmatprep.subr.mxu0 %v68
    %167 = vmatpush1.msra.mxu0 %v67
    %168 = vmatprep.subr.mxu0 %v70
    %169 = vmatpush1.msra.mxu0 %v69
    %170 = vmatprep.subr.mxu0 0.0
    %171 = vmatpush1.msra.mxu0 0.0
    %172 = vmatprep.subr.mxu0 0.0
    %173 = vmatpush1.msra.mxu0 0.0
    %174 = vmatprep.subr.mxu0 0.0
    %175 = vmatpush1.msra.mxu0 0.0
    %176 = vmatprep.subr.mxu0 0.0
    %177 = vmatpush1.msra.mxu0 0.0
    %178 = vmatprep.subr.mxu0 0.0
    %179 = vmatpush1.msra.mxu0 0.0
    %180 = vmatprep.subr.mxu0 0.0
    %181 = vmatpush1.msra.mxu0 0.0
    %182 = vmatprep.subr.mxu0 0.0
    %183 = vmatpush1.msra.mxu0 0.0
    %184 = vmatprep.subr.mxu0 0.0
    %185 = vmatpush1.msra.mxu0 0.0
    %186 = vmatprep.subr.mxu0 0.0
    %187 = vmatpush1.msra.mxu0 0.0
    %188 = vmatprep.subr.mxu0 0.0
    %189 = vmatpush1.msra.mxu0 0.0
    %190 = vmatprep.subr.mxu0 0.0
    %191 = vmatpush1.msra.mxu0 0.0
    %192 = vmatprep.subr.mxu0 0.0
    %193 = vmatpush1.msra.mxu0 0.0
    %194 = vmatprep.subr.mxu0 0.0
    %195 = vmatpush1.msra.mxu0 0.0
    %196 = vmatprep.subr.mxu0 0.0
    %197 = vmatpush1.msra.mxu0 0.0
    %198 = vmatprep.subr.mxu0 0.0
    %199 = vmatpush1.msra.mxu0 0.0
    %200 = vmatprep.subr.mxu0 0.0
    %201 = vmatpush1.msra.mxu0 0.0
    %202 = vmatprep.subr.mxu0 0.0
    %203 = vmatpush1.msra.mxu0 0.0
    %204 = vmatprep.subr.mxu0 0.0
    %205 = vmatpush1.msra.mxu0 0.0
    %206 = vmatprep.subr.mxu0 0.0
    %207 = vmatpush1.msra.mxu0 0.0
    %208 = vmatprep.subr.mxu0 0.0
    %209 = vmatpush1.msra.mxu0 0.0
    %210 = vmatprep.subr.mxu0 0.0
    %211 = vmatpush1.msra.mxu0 0.0
    %212 = vmatprep.subr.mxu0 0.0
    %213 = vmatpush1.msra.mxu0 0.0
    %214 = vmatprep.subr.mxu0 0.0
    %215 = vmatpush1.msra.mxu0 0.0
    %216 = vmatprep.subr.mxu0 0.0
    %217 = vmatpush1.msra.mxu0 0.0
    %218 = vmatprep.subr.mxu0 0.0
    %219 = vmatpush1.msra.mxu0 0.0
    %220 = vmatprep.subr.mxu0 0.0
    %221 = vmatpush1.msra.mxu0 0.0
    %222 = vmatprep.subr.mxu0 0.0
    %223 = vmatpush1.msra.mxu0 0.0
    %224 = vmatprep.subr.mxu0 0.0
    %225 = vmatpush1.msra.mxu0 0.0
    %226 = vmatprep.subr.mxu0 0.0
    %227 = vmatpush1.msra.mxu0 0.0
    %228 = vmatprep.mubr.f32.mxu0 0.0
    %229 = vmatmul.mubr.f32.gmra.mrb[0].mxu0 %v159
    %v230 = vpop.f32.mrb[0].mxu0
    %v231 = vadd.f32 %v147, %v230
    %v232 = vpop.f32.mrb[0].mxu0
    %v233 = vadd.f32 %v149, %v232
    %234 = vmatprep.mubr.f32.mxu0 0.0
    %235 = vmatmul.mubr.f32.gmra.mrb[0].mxu0 %v162
    %v236 = vpop.f32.mrb[0].mxu0
    %v237 = vadd.f32 %v153, %v236
    %v238 = vpop.f32.mrb[0].mxu0
    %v239 = vadd.f32 %v155, %v238
    %240 = vdwg.mxu0
    %v241 = vld [vmem:[%s4] sm:$0x3]
    %v243 = vlaneseq
    %v244 = vshrl.u32 %v243, 7
    %v245 = vsub.s32 0, %v244
    %v246 = vrot.slane %v241, %v245
    %v247 = vlaneseq
    %v248 = vshrl.u32 %v247, 7
    %v249 = vsub.s32 1, %v248
    %v250 = vrot.slane %v241, %v249
    %v253 = vadd.f32 %v231, %v246
    %v254 = vadd.f32 %v233, %v250
    %v255 = vadd.f32 %v237, %v246
    %v256 = vadd.f32 %v239, %v250
    %v257 = vmax.f32 %v253, 0.0
    %v258 = vmax.f32 %v254, 0.0
    %v259 = vmax.f32 %v255, 0.0
    %v260 = vmax.f32 %v256, 0.0
    %v261 = vld [vmem:[#allocation5] sm:$0xff]
    %v262 = vld [vmem:[#allocation5 + $0x8] sm:$0xff]
    %v263 = vld [vmem:[#allocation5 + $0x10] sm:$0xff]
    %v264 = vld [vmem:[#allocation5 + $0x18] sm:$0xff]
    %v265 = vld [vmem:[#allocation5 + $0x20] sm:$0xff]
    %v266 = vld [vmem:[#allocation5 + $0x28] sm:$0xff]
    %v267 = vld [vmem:[#allocation5 + $0x30] sm:$0xff]
    %v268 = vld [vmem:[#allocation5 + $0x38] sm:$0xff]
    %v269 = vld [vmem:[#allocation5 + $0x40] sm:$0xff]
    %v270 = vld [vmem:[#allocation5 + $0x48] sm:$0xff]
    %v271 = vld [vmem:[#allocation5 + $0x50] sm:$0xff]
    %v272 = vld [vmem:[#allocation5 + $0x58] sm:$0xff]
    %v273 = vld [vmem:[#allocation5 + $0x60] sm:$0xff]
    %v274 = vld [vmem:[#allocation5 + $0x68] sm:$0xff]
    %v275 = vld [vmem:[#allocation5 + $0x70] sm:$0xff]
    %v276 = vld [vmem:[#allocation5 + $0x78] sm:$0xff]
    %v277 = vld [vmem:[#allocation5 + $0x80] sm:$0xff]
    %v278 = vld [vmem:[#allocation5 + $0x88] sm:$0xff]
    %v279 = vld [vmem:[#allocation5 + $0x90] sm:$0xff]
    %v280 = vld [vmem:[#allocation5 + $0x98] sm:$0xff]
    %v281 = vld [vmem:[#allocation5 + $0xa0] sm:$0xff]
    %v282 = vld [vmem:[#allocation5 + $0xa8] sm:$0xff]
    %v283 = vld [vmem:[#allocation5 + $0xb0] sm:$0xff]
    %v284 = vld [vmem:[#allocation5 + $0xb8] sm:$0xff]
    %v285 = vld [vmem:[#allocation5 + $0xc0] sm:$0xff]
    %v286 = vld [vmem:[#allocation5 + $0xc8] sm:$0xff]
    %v287 = vld [vmem:[#allocation5 + $0xd0] sm:$0xff]
    %v288 = vld [vmem:[#allocation5 + $0xd8] sm:$0xff]
    %v289 = vld [vmem:[#allocation5 + $0xe0] sm:$0xff]
    %v290 = vld [vmem:[#allocation5 + $0xe8] sm:$0xff]
    %v291 = vld [vmem:[#allocation5 + $0xf0] sm:$0xff]
    %v292 = vld [vmem:[#allocation5 + $0xf8] sm:$0xff]
    %v293 = vld [vmem:[#allocation5 + $0x100] sm:$0xff]
    %v294 = vld [vmem:[#allocation5 + $0x108] sm:$0xff]
    %v295 = vld [vmem:[#allocation5 + $0x110] sm:$0xff]
    %v296 = vld [vmem:[#allocation5 + $0x118] sm:$0xff]
    %v297 = vld [vmem:[#allocation5 + $0x120] sm:$0xff]
    %v298 = vld [vmem:[#allocation5 + $0x128] sm:$0xff]
    %v299 = vld [vmem:[#allocation5 + $0x130] sm:$0xff]
    %v300 = vld [vmem:[#allocation5 + $0x138] sm:$0xff]
    %v301 = vld [vmem:[#allocation5 + $0x140] sm:$0xff]
    %v302 = vld [vmem:[#allocation5 + $0x148] sm:$0xff]
    %v303 = vld [vmem:[#allocation5 + $0x150] sm:$0xff]
    %v304 = vld [vmem:[#allocation5 + $0x158] sm:$0xff]
    %v305 = vld [vmem:[#allocation5 + $0x160] sm:$0xff]
    %v306 = vld [vmem:[#allocation5 + $0x168] sm:$0xff]
    %v307 = vld [vmem:[#allocation5 + $0x170] sm:$0xff]
    %v308 = vld [vmem:[#allocation5 + $0x178] sm:$0xff]
    %v309 = vld [vmem:[#allocation5 + $0x180] sm:$0xff]
    %v310 = vld [vmem:[#allocation5 + $0x188] sm:$0xff]
    %v311 = vld [vmem:[#allocation5 + $0x190] sm:$0xff]
    %v312 = vld [vmem:[#allocation5 + $0x198] sm:$0xff]
    %v313 = vld [vmem:[#allocation5 + $0x1a0] sm:$0xff]
    %v314 = vld [vmem:[#allocation5 + $0x1a8] sm:$0xff]
    %v315 = vld [vmem:[#allocation5 + $0x1b0] sm:$0xff]
    %v316 = vld [vmem:[#allocation5 + $0x1b8] sm:$0xff]
    %v317 = vld [vmem:[#allocation5 + $0x1c0] sm:$0xff]
    %v318 = vld [vmem:[#allocation5 + $0x1c8] sm:$0xff]
    %v319 = vld [vmem:[#allocation5 + $0x1d0] sm:$0xff]
    %v320 = vld [vmem:[#allocation5 + $0x1d8] sm:$0xff]
    %v321 = vld [vmem:[#allocation5 + $0x1e0] sm:$0xff]
    %v322 = vld [vmem:[#allocation5 + $0x1e8] sm:$0xff]
    %v323 = vld [vmem:[#allocation5 + $0x1f0] sm:$0xff]
    %v324 = vld [vmem:[#allocation5 + $0x1f8] sm:$0xff]
    %v325 = vld [vmem:[%s6] sm:$0x3]
    %v327 = vlaneseq
    %v328 = vshrl.u32 %v327, 7
    %v329 = vsub.s32 0, %v328
    %v330 = vrot.slane %v325, %v329
    %v331 = vlaneseq
    %v332 = vshrl.u32 %v331, 7
    %v333 = vsub.s32 1, %v332
    %v334 = vrot.slane %v325, %v333
    %337 = vmatprep.subr.mxu0 %v262
    %338 = vmatpush1.msra.mxu0 %v261
    %339 = vmatprep.subr.mxu0 %v264
    %340 = vmatpush1.msra.mxu0 %v263
    %341 = vmatprep.subr.mxu0 %v266
    %342 = vmatpush1.msra.mxu0 %v265
    %343 = vmatprep.subr.mxu0 %v268
    %344 = vmatpush1.msra.mxu0 %v267
    %345 = vmatprep.subr.mxu0 %v270
    %346 = vmatpush1.msra.mxu0 %v269
    %347 = vmatprep.subr.mxu0 %v272
    %348 = vmatpush1.msra.mxu0 %v271
    %349 = vmatprep.subr.mxu0 %v274
    %350 = vmatpush1.msra.mxu0 %v273
    %351 = vmatprep.subr.mxu0 %v276
    %352 = vmatpush1.msra.mxu0 %v275
    %353 = vmatprep.subr.mxu0 %v278
    %354 = vmatpush1.msra.mxu0 %v277
    %355 = vmatprep.subr.mxu0 %v280
    %356 = vmatpush1.msra.mxu0 %v279
    %357 = vmatprep.subr.mxu0 %v282
    %358 = vmatpush1.msra.mxu0 %v281
    %359 = vmatprep.subr.mxu0 %v284
    %360 = vmatpush1.msra.mxu0 %v283
    %361 = vmatprep.subr.mxu0 %v286
    %362 = vmatpush1.msra.mxu0 %v285
    %363 = vmatprep.subr.mxu0 %v288
    %364 = vmatpush1.msra.mxu0 %v287
    %365 = vmatprep.subr.mxu0 %v290
    %366 = vmatpush1.msra.mxu0 %v289
    %367 = vmatprep.subr.mxu0 %v292
    %368 = vmatpush1.msra.mxu0 %v291
    %369 = vmatprep.subr.mxu0 %v294
    %370 = vmatpush1.msra.mxu0 %v293
    %371 = vmatprep.subr.mxu0 %v296
    %372 = vmatpush1.msra.mxu0 %v295
    %373 = vmatprep.subr.mxu0 %v298
    %374 = vmatpush1.msra.mxu0 %v297
    %375 = vmatprep.subr.mxu0 %v300
    %376 = vmatpush1.msra.mxu0 %v299
    %377 = vmatprep.subr.mxu0 %v302
    %378 = vmatpush1.msra.mxu0 %v301
    %379 = vmatprep.subr.mxu0 %v304
    %380 = vmatpush1.msra.mxu0 %v303
    %381 = vmatprep.subr.mxu0 %v306
    %382 = vmatpush1.msra.mxu0 %v305
    %383 = vmatprep.subr.mxu0 %v308
    %384 = vmatpush1.msra.mxu0 %v307
    %385 = vmatprep.subr.mxu0 %v310
    %386 = vmatpush1.msra.mxu0 %v309
    %387 = vmatprep.subr.mxu0 %v312
    %388 = vmatpush1.msra.mxu0 %v311
    %389 = vmatprep.subr.mxu0 %v314
    %390 = vmatpush1.msra.mxu0 %v313
    %391 = vmatprep.subr.mxu0 %v316
    %392 = vmatpush1.msra.mxu0 %v315
    %393 = vmatprep.subr.mxu0 %v318
    %394 = vmatpush1.msra.mxu0 %v317
    %395 = vmatprep.subr.mxu0 %v320
    %396 = vmatpush1.msra.mxu0 %v319
    %397 = vmatprep.subr.mxu0 %v322
    %398 = vmatpush1.msra.mxu0 %v321
    %399 = vmatprep.subr.mxu0 %v324
    %400 = vmatpush1.msra.mxu0 %v323
    %401 = vmatprep.mubr.f32.mxu0 %v258
    %402 = vmatmul.mubr.f32.gmra.mrb[0].mxu0 %v257
    %v403 = vpop.f32.mrb[0].mxu0
    %v404 = vadd.f32 %v330, %v403
    %v405 = vpop.f32.mrb[0].mxu0
    %v406 = vadd.f32 %v334, %v405
    %407 = vmatprep.mubr.f32.mxu0 %v260
    %408 = vmatmul.mubr.f32.gmra.mrb[0].mxu0 %v259
    %v409 = vpop.f32.mrb[0].mxu0
    %v410 = vadd.f32 %v330, %v409
    %v411 = vpop.f32.mrb[0].mxu0
    %v412 = vadd.f32 %v334, %v411
    %413 = vdwg.mxu0
    %v414 = vmax.f32 %v404, 0.0
    %v415 = vmax.f32 %v406, 0.0
    %v416 = vmax.f32 %v410, 0.0
    %v417 = vmax.f32 %v412, 0.0
    %v418 = vld [vmem:[%s7] sm:$0x3]
    %v420 = vlaneseq
    %v421 = vshrl.u32 %v420, 7
    %v422 = vsub.s32 0, %v421
    %v423 = vrot.slane %v418, %v422
    %v424 = vlaneseq
    %v425 = vshrl.u32 %v424, 7
    %v426 = vsub.s32 1, %v425
    %v427 = vrot.slane %v418, %v426
    %v430 = vmul.f32 %v414, %v423
    %v431 = vmul.f32 %v415, %v427
    %v432 = vmul.f32 %v416, %v423
    %v433 = vmul.f32 %v417, %v427
    %v434 = vadd.f32 %v430, %v431
    %435 = vadd.xlane.f32.xlu0 %v434
    %v436 = vpop.xlane.xlu0 %435
    %v437 = vadd.f32 %v432, %v433
    %438 = vadd.xlane.f32.xlu0 %v437
    %v439 = vpop.xlane.xlu0 %438
    %s440 = sld [smem:[#allocation2]]
    %v441 = vstv %s440
    %v442 = vadd.f32 %v436, %v441
    %v443 = vadd.f32 %v439, %v441
    %vm444 = vcmask 7168
    %445 = vst.msk [vmem:[%s9] sm:$0xff] %vm444, %v442
    %446 = vst.msk [vmem:[%s9 + $0x8] sm:$0xff] %vm444, %v443
    // Predicated region
    $region46: #{q_fc_forward_pallas.1} parent=1 // pred_check
      _
    $region47: #{q_fc_forward_pallas.1} parent=1 // pred_check_branch
      %448 = sbr.rel (0) target = $region49
    $region48: #{q_fc_forward_pallas.1} parent=1 // pred_region
      _
    $region49: #{q_fc_forward_pallas.1} parent=1 // pred_fallthru
      _
    // Predicated region
    $region50: #{q_fc_forward_pallas.1} parent=1 // pred_check
      _
    $region51: #{q_fc_forward_pallas.1} parent=1 // pred_check_branch
      %450 = sbr.rel (0) target = $region53
    $region52: #{q_fc_forward_pallas.1} parent=1 // pred_region
      _
    $region53: #{q_fc_forward_pallas.1} parent=1 // pred_fallthru
      _
    %451 = vsyncpa [#allocation4], 1
    %452 = vsyncpa [#allocation6], 1

</llo_original>
